<compile_context>
chip_gen: v6e
topology: v6e:2x2x1
jax: 0.10.0
libtpu: 0.0.40
codegen_flags: <defaults>
</compile_context>

<pallas_src>
import functools
import math

import jax
import jax.numpy as jnp
from jax import lax
from jax.experimental import pallas as pl
from jax.experimental.pallas import tpu as pltpu

KERNEL_SIZE = 25
UPSAMPLE = 4
PAD = KERNEL_SIZE // 2            # 12 (ConstantPad1d(value=0) in the module)
HALO = 128                        # >= KERNEL_SIZE - 1, multiple of 128
VMEM_LIMIT = 48 * 1024 * 1024     # fits v7x's 64 MiB VMEM with headroom


def _round_up(x, m):
    return (x + m - 1) // m * m


# ----------------------------------------------------------------------------
# fc1: fused matmul + bias + ReLU (tiny; single block)
# ----------------------------------------------------------------------------
def fc_bias_relu_kernel(x_ref, w_ref, b_ref, o_ref):
    acc = jnp.dot(x_ref[...], w_ref[...], preferred_element_type=jnp.float32)
    acc = acc + b_ref[...]
    o_ref[...] = jnp.maximum(acc, 0.0).astype(o_ref.dtype)


def fc_relu(x, w, b, out_dtype=jnp.bfloat16):
    """x: (N, D_in), w: (D_in, D_out), b: (D_out,) -> (N, D_out)."""
    N, D_in = x.shape
    D_out = w.shape[1]
    xb = x.astype(jnp.bfloat16)
    wb = w.astype(jnp.bfloat16)
    b2 = b.reshape(1, D_out).astype(jnp.float32)
    return pl.pallas_call(
        fc_bias_relu_kernel,
        out_shape=jax.ShapeDtypeStruct((N, D_out), out_dtype),
        in_specs=[
            pl.BlockSpec((N, D_in), lambda: (0, 0)),
            pl.BlockSpec((D_in, D_out), lambda: (0, 0)),
            pl.BlockSpec((1, D_out), lambda: (0, 0)),
        ],
        out_specs=pl.BlockSpec((N, D_out), lambda: (0, 0)),
        compiler_params=pltpu.CompilerParams(vmem_limit_bytes=VMEM_LIMIT),
    )(xb, wb, b2)


# ----------------------------------------------------------------------------
# Transpose1dLayer (upsample path): K-tap conv + bias + activation
# ----------------------------------------------------------------------------
def conv1d_tap_kernel(x_cur_ref, x_nxt_ref, w_ref, b_ref, o_ref, *,
                      k_taps, tile_l, activation):
    # x_cur_ref : (1, C_in_p, TL)      bf16   current time tile
    # x_nxt_ref : (1, C_in_p, HALO)    bf16   halo (first K-1 cols used)
    # w_ref     : (K, C_out_p, C_in_p) bf16   tap-major, VMEM-resident
    # b_ref     : (C_out_p, 1)         f32
    # o_ref     : (1, C_out_p, TL)
    c_out_p = o_ref.shape[1]
    x_win = jnp.concatenate([x_cur_ref[0], x_nxt_ref[0]], axis=1)  # (C_in_p, TL+HALO)
    # bias folded into the accumulator init; all accumulation in f32.
    acc = jnp.broadcast_to(b_ref[...], (c_out_p, tile_l)).astype(jnp.float32)
    for k in range(k_taps):                                        # K matmuls on MXU
        xk = x_win[:, k:k + tile_l]                                # (C_in_p, TL)
        acc = acc + jnp.dot(w_ref[k], xk, preferred_element_type=jnp.float32)
    if activation == "relu":
        acc = jnp.maximum(acc, 0.0)
    elif activation == "tanh":
        acc = jnp.tanh(acc)
    o_ref[0] = acc.astype(o_ref.dtype)


def transpose1d_layer(x, weight, bias, *, activation, tile_l_max=512,
                      out_dtype=jnp.bfloat16):
    """nearest-upsample(x4) -> zero-pad(12) -> Conv1d(k=25, s=1) -> activation.

    x: (N, C_in, L) ; weight: (C_out, C_in, K) ; bias: (C_out,)
    returns (N, C_out, 4*L)
    """
    N, C_in, L = x.shape
    C_out, _, K = weight.shape
    L_out = UPSAMPLE * L

    TL = min(tile_l_max, _round_up(L_out, 128))      # lane-dense time tile
    num_tiles = pl.cdiv(L_out, TL)
    L_out_pad = num_tiles * TL
    total_L = (num_tiles + 1) * TL                   # room for the halo block

    C_in_p = _round_up(C_in, 16)
    C_out_p = _round_up(C_out, 16)
    halo_blocks_per_tile = TL // HALO

    # wrapper-side glue (memory-only, no K-fold blowup): upsample + zero pad
    x_up = jnp.repeat(x.astype(jnp.bfloat16), UPSAMPLE, axis=-1)   # (N, C_in, 4L)
    x_pad = jnp.pad(x_up, ((0, 0), (0, C_in_p - C_in),
                           (PAD, total_L - PAD - L_out)))          # (N, C_in_p, total_L)

    # weights tap-major so w_ref[k] is a clean (C_out_p, C_in_p) 2-D slice
    w_p = jnp.pad(weight, ((0, C_out_p - C_out), (0, C_in_p - C_in), (0, 0)))
    w_t = jnp.transpose(w_p, (2, 0, 1)).astype(jnp.bfloat16)       # (K, C_out_p, C_in_p)
    b_p = jnp.pad(bias, (0, C_out_p - C_out)).reshape(C_out_p, 1).astype(jnp.float32)

    kernel = functools.partial(conv1d_tap_kernel, k_taps=K, tile_l=TL,
                               activation=activation)

    out_isize = 4 if out_dtype == jnp.float32 else 2
    cost = pl.CostEstimate(
        flops=2 * N * L_out_pad * C_out_p * C_in_p * K,
        transcendentals=(N * C_out_p * L_out_pad) if activation == "tanh" else 0,
        bytes_accessed=(x_pad.size * 2 + w_t.size * 2
                        + N * C_out_p * L_out_pad * out_isize))

    y = pl.pallas_call(
        kernel,
        out_shape=jax.ShapeDtypeStruct((N, C_out_p, L_out_pad), out_dtype),
        grid=(N, num_tiles),
        in_specs=[
            pl.BlockSpec((1, C_in_p, TL), lambda n, t: (n, 0, t)),
            pl.BlockSpec((1, C_in_p, HALO),
                         lambda n, t: (n, 0, (t + 1) * halo_blocks_per_tile)),
            pl.BlockSpec((K, C_out_p, C_in_p), lambda n, t: (0, 0, 0)),
            pl.BlockSpec((C_out_p, 1), lambda n, t: (0, 0)),
        ],
        out_specs=pl.BlockSpec((1, C_out_p, TL), lambda n, t: (n, 0, t)),
        compiler_params=pltpu.CompilerParams(
            dimension_semantics=("parallel", "parallel"),
            vmem_limit_bytes=VMEM_LIMIT),
        cost_estimate=cost,
    )(x_pad, x_pad, w_t, b_p)

    return y[:, :C_out, :L_out]


# ----------------------------------------------------------------------------
# Full generator forward
# ----------------------------------------------------------------------------
def wavegan_generator_forward(z, params):
    h = fc_relu(z, params["fc_w"], params["fc_b"])                 # (N, 16*C0) bf16
    N = z.shape[0]
    C0 = params["deconv"][0][0].shape[1]
    h = h.reshape(N, C0, 16)                                       # == torch .view
    n_layers = len(params["deconv"])
    for i, (w, b) in enumerate(params["deconv"]):
        last = (i == n_layers - 1)
        h = transpose1d_layer(
            h, w, b,
            activation="tanh" if last else "relu",
            out_dtype=jnp.float32 if last else jnp.bfloat16)
    return h


# ----------------------------------------------------------------------------
# Pure-JAX reference with the same bf16 cast points (for correctness check)
# ----------------------------------------------------------------------------
def reference_forward(z, params):
    h = jnp.dot(z.astype(jnp.bfloat16), params["fc_w"].astype(jnp.bfloat16),
                preferred_element_type=jnp.float32) + params["fc_b"][None, :]
    h = jnp.maximum(h, 0.0).astype(jnp.bfloat16)
    N = z.shape[0]
    C0 = params["deconv"][0][0].shape[1]
    h = h.reshape(N, C0, 16)
    n_layers = len(params["deconv"])
    for i, (w, b) in enumerate(params["deconv"]):
        x_up = jnp.repeat(h.astype(jnp.bfloat16), UPSAMPLE, axis=-1)
        x_pad = jnp.pad(x_up, ((0, 0), (0, 0), (PAD, PAD)))
        y = lax.conv_general_dilated(
            x_pad, w.astype(jnp.bfloat16), window_strides=(1,), padding=[(0, 0)],
            dimension_numbers=("NCH", "OIH", "NCH"),
            preferred_element_type=jnp.float32)
        y = y + b[None, :, None]
        if i == n_layers - 1:
            h = jnp.tanh(y)
        else:
            h = jnp.maximum(y, 0.0).astype(jnp.bfloat16)
    return h


if __name__ == "__main__":
    # Small config consistent with the module: model_size=2, slice_len=16384
    # (dim_mul=16), num_channels=1, latent_dim=100, batch=2.
    model_size, dim_mul, num_channels, latent_dim, N = 2, 16, 1, 100, 2
    c0 = dim_mul * model_size                      # 32 channels after fc1
    fc_out = 4 * 4 * model_size * dim_mul          # 512 = c0 * 16

    key = jax.random.PRNGKey(0)
    keys = jax.random.split(key, 16)

    z = jax.random.normal(keys[0], (N, latent_dim), jnp.float32)

    fc_w = jax.random.normal(keys[1], (latent_dim, fc_out), jnp.float32) * \
        math.sqrt(2.0 / latent_dim)
    fc_b = jax.random.normal(keys[2], (fc_out,), jnp.float32) * 0.1

    chans = [c0, c0 // 2, c0 // 4, c0 // 8, c0 // 16, num_channels]  # 32..2,1
    deconv = []
    for i in range(5):
        cin, cout = chans[i], chans[i + 1]
        scale = math.sqrt(2.0 / (cin * KERNEL_SIZE))
        w = jax.random.normal(keys[3 + 2 * i], (cout, cin, KERNEL_SIZE),
                              jnp.float32) * scale
        b = jax.random.normal(keys[4 + 2 * i], (cout,), jnp.float32) * 0.1
        deconv.append((w, b))

    params = {"fc_w": fc_w, "fc_b": fc_b, "deconv": deconv}

    out = wavegan_generator_forward(z, params)
    out = jax.block_until_ready(out)
    assert out.shape == (N, num_channels, 16 * UPSAMPLE ** 5)   # (2, 1, 16384)

    ref = jax.block_until_ready(reference_forward(z, params))
    assert jnp.allclose(out, ref, atol=2e-2, rtol=2e-2), \
        float(jnp.max(jnp.abs(out - ref)))

    print("KERNEL_OK")
</pallas_src>

<mosaic_0001>
module attributes {stable_mosaic.version = 11 : i64} {
  func.func @fc_bias_relu_kernel(%arg0: memref<2x100xbf16, #tpu.memory_space<vmem>>, %arg1: memref<100x512xbf16, #tpu.memory_space<vmem>>, %arg2: memref<1x512xf32, #tpu.memory_space<vmem>>, %arg3: memref<2x512xbf16, #tpu.memory_space<vmem>>) attributes {dimension_semantics = [], scalar_prefetch = 0 : i64, scratch_operands = 0 : i64, tpu.core_type = #tpu.core_type<tc>} {
    %c0 = arith.constant 0 : index
    %c0_0 = arith.constant 0 : index
    %0 = vector.load %arg0[%c0, %c0_0] : memref<2x100xbf16, #tpu.memory_space<vmem>>, vector<2x100xbf16>
    %c0_1 = arith.constant 0 : index
    %c0_2 = arith.constant 0 : index
    %1 = vector.load %arg1[%c0_1, %c0_2] : memref<100x512xbf16, #tpu.memory_space<vmem>>, vector<100x512xbf16>
    %cst = arith.constant dense<0.000000e+00> : vector<2x512xf32>
    %2 = tpu.matmul %0, %1, %cst {dimension_numbers = #tpu.dot_dimension_numbers<[1], [0], [0], [1], [0, 0, 1, 1], [], []>} : vector<2x100xbf16>, vector<100x512xbf16>, vector<2x512xf32> -> vector<2x512xf32>
    %c0_3 = arith.constant 0 : index
    %c0_4 = arith.constant 0 : index
    %3 = vector.load %arg2[%c0_3, %c0_4] : memref<1x512xf32, #tpu.memory_space<vmem>>, vector<1x512xf32>
    %4 = vector.broadcast %3 : vector<1x512xf32> to vector<2x512xf32>
    %5 = arith.addf %2, %4 : vector<2x512xf32>
    %cst_5 = arith.constant 0.000000e+00 : f32
    %6 = vector.broadcast %cst_5 : f32 to vector<2x512xf32>
    %7 = arith.maximumf %5, %6 : vector<2x512xf32>
    %8 = arith.truncf %7 : vector<2x512xf32> to vector<2x512xbf16>
    %c0_6 = arith.constant 0 : index
    %c0_7 = arith.constant 0 : index
    %9 = vector.load %arg3[%c0_6, %c0_7] : memref<2x512xbf16, #tpu.memory_space<vmem>>, vector<2x512xbf16>
    tpu.vector_store %arg3[%c0_6, %c0_7], %8 {strides = array<i32>} : memref<2x512xbf16, #tpu.memory_space<vmem>>, vector<2x512xbf16>,
    return
  }
}

</mosaic_0001>

<llo_original>
// kernel: tpu_custom_call.1
$region0: #{tpu_custom_call.1}
  #allocation0 [shape = 'u32[]', space=smem, size = 0x4, offset = 0x4, fixed_abs, tag = 'smem constant byte address 0x4 - core index']
  #allocation1 [shape = 'u32[144,128]{1,0:T(1,128)}', space=vmem, size = 0x12000, scoped, tag = 'internal scratch']
  %s0 = inlined_call_operand.hbm [shape: bf16[2,100], index: 0, kind: input, shape index: {}]
  %s1 = inlined_call_operand.hbm [shape: bf16[100,512], index: 1, kind: input, shape index: {}]
  %s2 = inlined_call_operand.hbm [shape: f32[1,512], index: 2, kind: input, shape index: {}]
  %s3 = inlined_call_operand.hbm [shape: bf16[2,512], index: 3, kind: output, shape index: {}]
  %s4 = sld [smem:[#allocation0]]
  $region34: #{tpu_custom_call.1} parent=0
    _
  %s6 = ssub.s32 1, %s4
  %s7 = scalar_select 0, %s6, %s4
  $region1: #{tpu_custom_call.1} parent=0
    #allocation2 [shape = 'u8[512]{0}', space=vmem, size = 0x400, scoped, tag = 'input window, operand 0, single buffered']
    #allocation3 [shape = 's32[1]{0}', space=sflag, size = 0x4, scoped, tag = 'scoped memory for tpu_custom_call.1']
    #allocation4 [shape = 's32[1]{0}', space=sflag, size = 0x4, scoped, tag = 'scoped memory for tpu_custom_call.1']
    #allocation5 [shape = 'u8[106496]{0}', space=vmem, size = 0x1a000, scoped, tag = 'input window, operand 1, single buffered']
    #allocation6 [shape = 's32[1]{0}', space=sflag, size = 0x4, scoped, tag = 'scoped memory for tpu_custom_call.1']
    #allocation7 [shape = 'u8[2048]{0}', space=vmem, size = 0x800, scoped, tag = 'input window, operand 2, single buffered']
    #allocation8 [shape = 'u8[2048]{0}', space=vmem, size = 0x800, scoped, tag = 'output window, operand 0, single buffered']
    %8 = vsyncpa [#allocation3], 0
    %9 = vsyncpa [#allocation6], 0
    %10 = vsyncpa [#allocation4], 0
    // Predicated region
    $region2: #{tpu_custom_call.1} parent=1 // pred_check
      _
    $region3: #{tpu_custom_call.1} parent=1 // pred_check_branch
      %12 = sbr.rel (0) target = $region5
    $region4: #{tpu_custom_call.1} parent=1 // pred_region
      %s14 = ssub.s32 16, 16
      %15 = vsyncadd [#allocation3], %s14
      %s17 = sshll.u32 [#allocation2], 4
      %s18 = int_to_ptr.vmem [resolvable:$true] %s17
      %20 = dma.hbm_to_vmem [thread:$0]  %s0, 16, %s18, [#allocation3]
    $region5: #{tpu_custom_call.1} parent=1 // pred_fallthru
      _
    // Predicated region
    $region6: #{tpu_custom_call.1} parent=1 // pred_check
      _
    $region7: #{tpu_custom_call.1} parent=1 // pred_check_branch
      %22 = sbr.rel (0) target = $region9
    $region8: #{tpu_custom_call.1} parent=1 // pred_region
      %s24 = ssub.s32 3328, 3328
      %25 = vsyncadd [#allocation6], %s24
      %s26 = sshll.u32 [#allocation5], 4
      %s27 = int_to_ptr.vmem [resolvable:$true] %s26
      %32 = dma.hbm_to_vmem [thread:$0]  %s1, 3328, %s27, [#allocation6], 256, 256, 16
    $region9: #{tpu_custom_call.1} parent=1 // pred_fallthru
      _
    // Predicated region
    $region10: #{tpu_custom_call.1} parent=1 // pred_check
      _
    $region11: #{tpu_custom_call.1} parent=1 // pred_check_branch
      %34 = sbr.rel (0) target = $region13
    $region12: #{tpu_custom_call.1} parent=1 // pred_region
      %s36 = ssub.s32 64, 64
      %37 = vsyncadd [#allocation6], %s36
      %s39 = sshll.u32 [#allocation7], 4
      %s40 = int_to_ptr.vmem [resolvable:$true] %s39
      %42 = dma.hbm_to_vmem [thread:$0]  %s2, 64, %s40, [#allocation6]
    $region13: #{tpu_custom_call.1} parent=1 // pred_fallthru
      _
    // Predicated region
    $region14: #{tpu_custom_call.1} parent=1 // pred_check
      _
    $region15: #{tpu_custom_call.1} parent=1 // pred_check_branch
      %44 = sbr.rel (0) target = $region17
    $region16: #{tpu_custom_call.1} parent=1 // pred_region
      %45 = dma.done [#allocation3], 16
    $region17: #{tpu_custom_call.1} parent=1 // pred_fallthru
      _
    // Predicated region
    $region18: #{tpu_custom_call.1} parent=1 // pred_check
      _
    $region19: #{tpu_custom_call.1} parent=1 // pred_check_branch
      %47 = sbr.rel (0) target = $region21
    $region20: #{tpu_custom_call.1} parent=1 // pred_region
      %48 = dma.done [#allocation6], 3328
    $region21: #{tpu_custom_call.1} parent=1 // pred_fallthru
      _
    // Predicated region
    $region22: #{tpu_custom_call.1} parent=1 // pred_check
      _
    $region23: #{tpu_custom_call.1} parent=1 // pred_check_branch
      %50 = sbr.rel (0) target = $region25
    $region24: #{tpu_custom_call.1} parent=1 // pred_region
      %51 = dma.done [#allocation6], 64
    $region25: #{tpu_custom_call.1} parent=1 // pred_fallthru
      _
    %v53 = vld [vmem:[#allocation2] sm:$0x1]
    %v54 = vld [vmem:[#allocation5] sm:$0xff]
    %v55 = vld [vmem:[#allocation5 + $0x8] sm:$0xff]
    %v56 = vld [vmem:[#allocation5 + $0x10] sm:$0xff]
    %v57 = vld [vmem:[#allocation5 + $0x18] sm:$0xff]
    %v58 = vld [vmem:[#allocation5 + $0x20] sm:$0xff]
    %v59 = vld [vmem:[#allocation5 + $0x28] sm:$0xff]
    %v60 = vld [vmem:[#allocation5 + $0x30] sm:$0xff]
    %v61 = vld [vmem:[#allocation5 + $0x38] sm:$0xff]
    %v62 = vld [vmem:[#allocation5 + $0x40] sm:$0xff]
    %v63 = vld [vmem:[#allocation5 + $0x48] sm:$0xff]
    %v64 = vld [vmem:[#allocation5 + $0x50] sm:$0xff]
    %v65 = vld [vmem:[#allocation5 + $0x58] sm:$0xff]
    %v66 = vld [vmem:[#allocation5 + $0x60] sm:$0xff]
    %v67 = vld [vmem:[#allocation5 + $0x68] sm:$0xff]
    %v68 = vld [vmem:[#allocation5 + $0x70] sm:$0xff]
    %v69 = vld [vmem:[#allocation5 + $0x78] sm:$0xff]
    %v70 = vld [vmem:[#allocation5 + $0x80] sm:$0xff]
    %v71 = vld [vmem:[#allocation5 + $0x88] sm:$0xff]
    %v72 = vld [vmem:[#allocation5 + $0x90] sm:$0xff]
    %v73 = vld [vmem:[#allocation5 + $0x98] sm:$0xff]
    %v74 = vld [vmem:[#allocation5 + $0xa0] sm:$0xff]
    %v75 = vld [vmem:[#allocation5 + $0xa8] sm:$0xff]
    %v76 = vld [vmem:[#allocation5 + $0xb0] sm:$0xff]
    %v77 = vld [vmem:[#allocation5 + $0xb8] sm:$0xff]
    %v78 = vld [vmem:[#allocation5 + $0xc0] sm:$0x33]
    %v79 = vld [vmem:[#allocation5 + $0xc8] sm:$0x33]
    %v80 = vld [vmem:[#allocation7] sm:$0xf]
    %v82 = vlaneseq
    %v83 = vshrl.u32 %v82, 7
    %v84 = vsub.s32 0, %v83
    %v85 = vrot.slane %v80, %v84
    %v86 = vlaneseq
    %v87 = vshrl.u32 %v86, 7
    %v88 = vsub.s32 1, %v87
    %v89 = vrot.slane %v80, %v88
    %v90 = vlaneseq
    %v91 = vshrl.u32 %v90, 7
    %v92 = vsub.s32 2, %v91
    %v93 = vrot.slane %v80, %v92
    %v94 = vlaneseq
    %v95 = vshrl.u32 %v94, 7
    %v96 = vsub.s32 3, %v95
    %v97 = vrot.slane %v80, %v96
    %v128 = vunpack.c.l.b16 %v54
    %v129 = vunpack.c.h.b16 %v54
    %v130 = vunpack.c.l.b16 %v55
    %v131 = vunpack.c.h.b16 %v55
    %v132 = vunpack.c.l.b16 %v56
    %v133 = vunpack.c.h.b16 %v56
    %v134 = vunpack.c.l.b16 %v57
    %v135 = vunpack.c.h.b16 %v57
    %v136 = vunpack.c.l.b16 %v58
    %v137 = vunpack.c.h.b16 %v58
    %v138 = vunpack.c.l.b16 %v59
    %v139 = vunpack.c.h.b16 %v59
    %v140 = vunpack.c.l.b16 %v60
    %v141 = vunpack.c.h.b16 %v60
    %v142 = vunpack.c.l.b16 %v61
    %v143 = vunpack.c.h.b16 %v61
    %v144 = vunpack.c.l.b16 %v62
    %v145 = vunpack.c.h.b16 %v62
    %v146 = vunpack.c.l.b16 %v63
    %v147 = vunpack.c.h.b16 %v63
    %v148 = vunpack.c.l.b16 %v64
    %v149 = vunpack.c.h.b16 %v64
    %v150 = vunpack.c.l.b16 %v65
    %v151 = vunpack.c.h.b16 %v65
    %v152 = vunpack.c.l.b16 %v66
    %v153 = vunpack.c.h.b16 %v66
    %v154 = vunpack.c.l.b16 %v67
    %v155 = vunpack.c.h.b16 %v67
    %v156 = vunpack.c.l.b16 %v68
    %v157 = vunpack.c.h.b16 %v68
    %v158 = vunpack.c.l.b16 %v69
    %v159 = vunpack.c.h.b16 %v69
    %v160 = vunpack.c.l.b16 %v70
    %v161 = vunpack.c.h.b16 %v70
    %v162 = vunpack.c.l.b16 %v71
    %v163 = vunpack.c.h.b16 %v71
    %v164 = vunpack.c.l.b16 %v72
    %v165 = vunpack.c.h.b16 %v72
    %v166 = vunpack.c.l.b16 %v73
    %v167 = vunpack.c.h.b16 %v73
    %v168 = vunpack.c.l.b16 %v74
    %v169 = vunpack.c.h.b16 %v74
    %v170 = vunpack.c.l.b16 %v75
    %v171 = vunpack.c.h.b16 %v75
    %v172 = vunpack.c.l.b16 %v76
    %v173 = vunpack.c.h.b16 %v76
    %v174 = vunpack.c.l.b16 %v77
    %v175 = vunpack.c.h.b16 %v77
    %v176 = vunpack.c.l.b16 %v78
    %v177 = vunpack.c.h.b16 %v78
    %v178 = vunpack.c.l.b16 %v79
    %v179 = vunpack.c.h.b16 %v79
    %v180 = vpack.c.b16 %v132, %v128
    %v181 = vpack.c.b16 %v133, %v129
    %v182 = vpack.c.b16 %v134, %v130
    %v183 = vpack.c.b16 %v135, %v131
    %v184 = vpack.c.b16 %v140, %v136
    %v185 = vpack.c.b16 %v141, %v137
    %v186 = vpack.c.b16 %v142, %v138
    %v187 = vpack.c.b16 %v143, %v139
    %v188 = vpack.c.b16 %v148, %v144
    %v189 = vpack.c.b16 %v149, %v145
    %v190 = vpack.c.b16 %v150, %v146
    %v191 = vpack.c.b16 %v151, %v147
    %v192 = vpack.c.b16 %v156, %v152
    %v193 = vpack.c.b16 %v157, %v153
    %v194 = vpack.c.b16 %v158, %v154
    %v195 = vpack.c.b16 %v159, %v155
    %v196 = vpack.c.b16 %v164, %v160
    %v197 = vpack.c.b16 %v165, %v161
    %v198 = vpack.c.b16 %v166, %v162
    %v199 = vpack.c.b16 %v167, %v163
    %v200 = vpack.c.b16 %v172, %v168
    %v201 = vpack.c.b16 %v173, %v169
    %v202 = vpack.c.b16 %v174, %v170
    %v203 = vpack.c.b16 %v175, %v171
    %v204 = vpack.c.b16 %v176, %v176
    %v205 = vpack.c.b16 %v177, %v177
    %v206 = vpack.c.b16 %v178, %v178
    %v207 = vpack.c.b16 %v179, %v179
    %vm232 = vcmask 818176
    %v234 = vsel %vm232, %v53, 0
    %vm236 = vcmask 1041408
    %v238 = vsel %vm236, %v204, 0
    %v241 = vsel %vm236, %v205, 0
    %v244 = vsel %vm236, %v206, 0
    %v247 = vsel %vm236, %v207, 0
    %249 = vmatprep.subr.bf16.mxu0 0
    %250 = vmatpush1.bf16.msra.mxu0 0
    %251 = vmatprep.subr.bf16.mxu0 %v241
    %252 = vmatpush1.bf16.msra.mxu0 %v238
    %253 = vmatprep.subr.bf16.mxu0 %v201
    %254 = vmatpush1.bf16.msra.mxu0 %v200
    %255 = vmatprep.subr.bf16.mxu0 %v197
    %256 = vmatpush1.bf16.msra.mxu0 %v196
    %257 = vmatprep.subr.bf16.mxu0 %v193
    %258 = vmatpush1.bf16.msra.mxu0 %v192
    %259 = vmatprep.subr.bf16.mxu0 %v189
    %260 = vmatpush1.bf16.msra.mxu0 %v188
    %261 = vmatprep.subr.bf16.mxu0 %v185
    %262 = vmatpush1.bf16.msra.mxu0 %v184
    %263 = vmatprep.subr.bf16.mxu0 %v181
    %264 = vmatpush1.bf16.msra.mxu0 %v180
    %265 = vmatprep.subr.bf16.mxu0 0
    %266 = vmatpush2.bf16.msra.mxu0 0
    %267 = vmatprep.subr.bf16.mxu0 0
    %268 = vmatpush2.bf16.msra.mxu0 0
    %269 = vmatprep.subr.bf16.mxu0 0
    %270 = vmatpush2.bf16.msra.mxu0 0
    %271 = vmatprep.subr.bf16.mxu0 0
    %272 = vmatpush2.bf16.msra.mxu0 0
    %273 = vmatprep.subr.bf16.mxu0 0
    %274 = vmatpush2.bf16.msra.mxu0 0
    %275 = vmatprep.subr.bf16.mxu0 0
    %276 = vmatpush2.bf16.msra.mxu0 0
    %277 = vmatprep.subr.bf16.mxu0 0
    %278 = vmatpush2.bf16.msra.mxu0 0
    %279 = vmatprep.subr.bf16.mxu0 0
    %280 = vmatpush2.bf16.msra.mxu0 0
    %281 = vmatprep.mubr.bf16.mxu0 0
    %282 = vmatmul.mubr.bf16.gmra.mxu0 %v234
    %v283 = vpop.f32.mrf.mxu0
    %v284 = vadd.f32 %v85, %v283
    %v285 = vpop.f32.mrf.mxu0
    %v286 = vadd.f32 %v89, %v285
    %v287 = vpop.f32.mrf.mxu0
    %v288 = vpop.f32.mrf.mxu0
    %289 = vdwg.mxu0
    %290 = vmatprep.subr.bf16.mxu0 0
    %291 = vmatpush1.bf16.msra.mxu0 0
    %292 = vmatprep.subr.bf16.mxu0 %v247
    %293 = vmatpush1.bf16.msra.mxu0 %v244
    %294 = vmatprep.subr.bf16.mxu0 %v203
    %295 = vmatpush1.bf16.msra.mxu0 %v202
    %296 = vmatprep.subr.bf16.mxu0 %v199
    %297 = vmatpush1.bf16.msra.mxu0 %v198
    %298 = vmatprep.subr.bf16.mxu0 %v195
    %299 = vmatpush1.bf16.msra.mxu0 %v194
    %300 = vmatprep.subr.bf16.mxu0 %v191
    %301 = vmatpush1.bf16.msra.mxu0 %v190
    %302 = vmatprep.subr.bf16.mxu0 %v187
    %303 = vmatpush1.bf16.msra.mxu0 %v186
    %304 = vmatprep.subr.bf16.mxu0 %v183
    %305 = vmatpush1.bf16.msra.mxu0 %v182
    %306 = vmatprep.subr.bf16.mxu0 0
    %307 = vmatpush2.bf16.msra.mxu0 0
    %308 = vmatprep.subr.bf16.mxu0 0
    %309 = vmatpush2.bf16.msra.mxu0 0
    %310 = vmatprep.subr.bf16.mxu0 0
    %311 = vmatpush2.bf16.msra.mxu0 0
    %312 = vmatprep.subr.bf16.mxu0 0
    %313 = vmatpush2.bf16.msra.mxu0 0
    %314 = vmatprep.subr.bf16.mxu0 0
    %315 = vmatpush2.bf16.msra.mxu0 0
    %316 = vmatprep.subr.bf16.mxu0 0
    %317 = vmatpush2.bf16.msra.mxu0 0
    %318 = vmatprep.subr.bf16.mxu0 0
    %319 = vmatpush2.bf16.msra.mxu0 0
    %320 = vmatprep.subr.bf16.mxu0 0
    %321 = vmatpush2.bf16.msra.mxu0 0
    %322 = vmatprep.mubr.bf16.mxu0 0
    %323 = vmatmul.mubr.bf16.gmra.mxu0 %v234
    %v324 = vpop.f32.mrf.mxu0
    %v325 = vadd.f32 %v93, %v324
    %v326 = vpop.f32.mrf.mxu0
    %v327 = vadd.f32 %v97, %v326
    %v328 = vpop.f32.mrf.mxu0
    %v329 = vpop.f32.mrf.mxu0
    %330 = vdwg.mxu0
    %v331 = vmax.f32 %v284, 0.0
    %v332 = vmax.f32 %v286, 0.0
    %v333 = vmax.f32 %v325, 0.0
    %v334 = vmax.f32 %v327, 0.0
    %v335 = vpack.c.bf16 %v331, %v331
    %v336 = vpack.c.bf16 %v332, %v332
    %v337 = vpack.c.bf16 %v333, %v333
    %v338 = vpack.c.bf16 %v334, %v334
    %v343 = vcombine.low %v335, %v336
    %v344 = vcombine.low %v337, %v338
    %v346 = vunpack.c.l.s4 1966171168
    %v347 = vunpack.c.0.s8 %v346
    %v348 = vlaneseq
    %v349 = vshrl.u32 %v348, 7
    %v350 = vsub.s32 %v347, %v349
    %v351 = vrot.slane %v343, %v350
    %v353 = vunpack.c.l.s4 1966171168
    %v354 = vunpack.c.0.s8 %v353
    %v355 = vlaneseq
    %v356 = vshrl.u32 %v355, 7
    %v357 = vsub.s32 %v354, %v356
    %v358 = vrot.slane %v344, %v357
    %v359 = vcombine.low %v351, %v358
    %v361 = vunpack.c.l.s4 1966171168
    %v362 = vunpack.c.0.s8 %v361
    %v363 = vlaneseq
    %v364 = vshrl.u32 %v363, 7
    %v365 = vsub.s32 %v362, %v364
    %v366 = vrot.slane %v359, %v365
    %368 = vst [vmem:[#allocation8] sm:$0xf] %v366
    // Predicated region
    $region26: #{tpu_custom_call.1} parent=1 // pred_check
      _
    $region27: #{tpu_custom_call.1} parent=1 // pred_check_branch
      %370 = sbr.rel (0) target = $region29
    $region28: #{tpu_custom_call.1} parent=1 // pred_region
      %s372 = ssub.s32 64, 64
      %373 = vsyncadd [#allocation4], %s372
      %s375 = sshll.u32 [#allocation8], 4
      %s376 = int_to_ptr.vmem [resolvable:$true] %s375
      %378 = dma.vmem_to_hbm [thread:$0]  %s376, 64, %s3, [#allocation4]
    $region29: #{tpu_custom_call.1} parent=1 // pred_fallthru
      _
    // Predicated region
    $region30: #{tpu_custom_call.1} parent=1 // pred_check
      _
    $region31: #{tpu_custom_call.1} parent=1 // pred_check_branch
      %380 = sbr.rel (0) target = $region33
    $region32: #{tpu_custom_call.1} parent=1 // pred_region
      %381 = dma.done [#allocation4], 64
    $region33: #{tpu_custom_call.1} parent=1 // pred_fallthru
      _
    %382 = vsyncpa [#allocation3], 1
    %383 = vsyncpa [#allocation6], 1
    %384 = vsyncpa [#allocation4], 1

</llo_original>
